<compile_context>
chip_gen: v7x
topology: tpu7x:2x2x1
jax: 0.10.0
libtpu: 0.0.40
codegen_flags: <defaults>
</compile_context>

<pallas_src>
import jax
import jax.numpy as jnp
from jax.experimental import pallas as pl
from jax.experimental.pallas import tpu as pltpu


def _semantic_inference_kernel(cls_ref, pred_ref, out_ref):
    # cls_ref : (1, Q, C+1)  f32 class logits for this batch element
    # pred_ref: (1, Q, TS)   mask logits (native dtype) for this spatial tile
    # out_ref : (1, C, TS)   normalized semantic segmentation tile (f32)
    logits = cls_ref[0]                                        # (Q, C+1) f32

    # softmax over the class dim, then drop the trailing no-object class.
    # Tiny (Q x C+1) -> recomputing it per S-tile is negligible.
    m = jnp.max(logits, axis=-1, keepdims=True)
    e = jnp.exp(logits - m)
    probs = e / jnp.sum(e, axis=-1, keepdims=True)             # (Q, C+1)
    probs = probs[:, :-1]                                      # (Q, C)

    # sigmoid on the mask-logit tile; upcast to f32 (no bf16 VPU/EUP on v5e).
    masks = jax.nn.sigmoid(pred_ref[0].astype(jnp.float32))    # (Q, TS)

    # einsum 'qc,qs->cs' (contract over the query axis) on the MXU.
    semseg = jax.lax.dot_general(
        probs, masks,
        dimension_numbers=(((0,), (0,)), ((), ())),
        preferred_element_type=jnp.float32,
    )                                                          # (C, TS)

    # normalize over the class axis: semseg /= semseg.sum(0)
    # One approx EUP reciprocal on the (1, TS) row + C broadcast multiplies.
    denom = jnp.sum(semseg, axis=0, keepdims=True)             # (1, TS)
    out_ref[0] = semseg * pl.reciprocal(denom, approx=True)


def _pick_spatial_tile(S, cap):
    """Largest multiple of 128 that divides S and is <= cap; else full S."""
    if S <= cap:
        return S
    best = 0
    ts = 128
    while ts <= cap:
        if S % ts == 0:
            best = ts
        ts += 128
    return best if best > 0 else S


def det_head_inference(mask_cls, mask_pred, *, tile_s_cap=4096):
    """mask_cls: [B, Q, C+1], mask_pred: [B, Q, D, H, W] -> [B, C, D, H, W] f32.

    mask_pred is consumed in its native dtype (bf16 recommended: the kernel is
    HBM-bound and the (B,Q,S) mask-logit read dominates traffic).
    """
    B, Q, Cp1 = mask_cls.shape
    _, _, D, H, W = mask_pred.shape
    C = Cp1 - 1
    S = D * H * W
    TS = _pick_spatial_tile(S, tile_s_cap)
    num_s_tiles = S // TS

    pred_flat = mask_pred.reshape(B, Q, S)                     # keep native dtype
    cls_f32 = mask_cls.astype(jnp.float32)                     # tiny; keep f32

    out_flat = pl.pallas_call(
        _semantic_inference_kernel,
        out_shape=jax.ShapeDtypeStruct((B, C, S), jnp.float32),
        grid=(B, num_s_tiles),
        in_specs=[
            pl.BlockSpec((1, Q, Cp1), lambda b, s: (b, 0, 0)),
            pl.BlockSpec((1, Q, TS), lambda b, s: (b, 0, s)),
        ],
        out_specs=pl.BlockSpec((1, C, TS), lambda b, s: (b, 0, s)),
        compiler_params=pltpu.CompilerParams(
            dimension_semantics=("parallel", "parallel"),
            # 32 MiB scoped VMEM: safe on v5e/v6e (128 MiB) and v7x (64 MiB),
            # and comfortably fits double-buffered (Q+C) x TS tiles.
            vmem_limit_bytes=32 * 1024 * 1024,
        ),
    )(cls_f32, pred_flat)

    return out_flat.reshape(B, C, D, H, W)


def _reference(mask_cls, mask_pred):
    # pure-JAX mirror of DetHead.semantic_inference, batched
    probs = jax.nn.softmax(mask_cls.astype(jnp.float32), axis=-1)[..., :-1]
    masks = jax.nn.sigmoid(mask_pred.astype(jnp.float32))
    semseg = jnp.einsum('bqc,bqdhw->bcdhw', probs, masks,
                        precision=jax.lax.Precision.HIGHEST)
    return semseg / jnp.sum(semseg, axis=1, keepdims=True)


if __name__ == "__main__":
    key = jax.random.PRNGKey(0)
    B, Q = 2, 8                 # batch, num queries
    num_classes = 4             # pred_logits have num_classes + 1 columns (no-object)
    D, H, W = 4, 8, 16          # small 3D spatial grid (S = 512)

    k1, k2 = jax.random.split(key)
    mask_cls = jax.random.normal(k1, (B, Q, num_classes + 1), dtype=jnp.float32)
    # mask logits live in bf16 to exercise the reduced-HBM-traffic path
    mask_pred = jax.random.normal(
        k2, (B, Q, D, H, W), dtype=jnp.float32).astype(jnp.bfloat16)

    # small tile cap so the S axis is actually tiled (grid = (2, 4), TS = 128)
    out = det_head_inference(mask_cls, mask_pred, tile_s_cap=128)
    out = jax.block_until_ready(out)

    ref = jax.block_until_ready(_reference(mask_cls, mask_pred))
    assert out.shape == (B, num_classes, D, H, W)
    # tolerance loosened for bf16 mask logits + approx reciprocal normalization
    assert jnp.allclose(out, ref, atol=1e-2, rtol=1e-2)

    print("KERNEL_OK")
</pallas_src>

<mosaic_0001>
module attributes {stable_mosaic.version = 11 : i64} {
  func.func @_semantic_inference_kernel(%arg0: i32, %arg1: i32, %arg2: memref<1x8x5xf32, #tpu.memory_space<vmem>>, %arg3: memref<1x8x128xbf16, #tpu.memory_space<vmem>>, %arg4: memref<1x4x128xf32, #tpu.memory_space<vmem>>) attributes {dimension_semantics = [#tpu.dimension_semantics<parallel>, #tpu.dimension_semantics<parallel>], iteration_bounds = array<i64: 2, 4>, scalar_prefetch = 0 : i64, scratch_operands = 0 : i64, tpu.core_type = #tpu.core_type<tc>, window_params = [{transform_indices = @transform_0, window_bounds = array<i64: 1, 8, 5>}, {transform_indices = @transform_1, window_bounds = array<i64: 1, 8, 128>}, {transform_indices = @transform_2, window_bounds = array<i64: 1, 4, 128>}]} {
    %c0 = arith.constant 0 : index
    %c0_0 = arith.constant 0 : index
    %c0_1 = arith.constant 0 : index
    %0 = vector.load %arg2[%c0, %c0_0, %c0_1] : memref<1x8x5xf32, #tpu.memory_space<vmem>>, vector<1x8x5xf32>
    %1 = vector.shape_cast %0 : vector<1x8x5xf32> to vector<8x5xf32>
    %cst = arith.constant dense<0xFF800000> : vector<8xf32>
    %2 = vector.multi_reduction <maximumf>, %1, %cst [1] : vector<8x5xf32> to vector<8xf32>
    %3 = vector.shape_cast %2 : vector<8xf32> to vector<8x1xf32>
    %4 = vector.broadcast %3 : vector<8x1xf32> to vector<8x5xf32>
    %5 = arith.subf %1, %4 : vector<8x5xf32>
    %6 = math.exp %5 : vector<8x5xf32>
    %cst_2 = arith.constant dense<0.000000e+00> : vector<8xf32>
    %7 = vector.multi_reduction <add>, %6, %cst_2 [1] : vector<8x5xf32> to vector<8xf32>
    %8 = vector.shape_cast %7 : vector<8xf32> to vector<8x1xf32>
    %9 = vector.broadcast %8 : vector<8x1xf32> to vector<8x5xf32>
    %10 = arith.divf %6, %9 : vector<8x5xf32>
    %11 = vector.extract_strided_slice %10 {offsets = [0, 0], sizes = [8, 4], strides = [1, 1]} : vector<8x5xf32> to vector<8x4xf32>
    %c0_3 = arith.constant 0 : index
    %c0_4 = arith.constant 0 : index
    %c0_5 = arith.constant 0 : index
    %12 = vector.load %arg3[%c0_3, %c0_4, %c0_5] : memref<1x8x128xbf16, #tpu.memory_space<vmem>>, vector<1x8x128xbf16>
    %13 = vector.shape_cast %12 : vector<1x8x128xbf16> to vector<8x128xbf16>
    %14 = arith.extf %13 : vector<8x128xbf16> to vector<8x128xf32>
    %15 = arith.negf %14 : vector<8x128xf32>
    %16 = math.exp %15 : vector<8x128xf32>
    %cst_6 = arith.constant 1.000000e+00 : f32
    %17 = vector.broadcast %cst_6 : f32 to vector<8x128xf32>
    %18 = arith.addf %17, %16 : vector<8x128xf32>
    %19 = arith.divf %17, %18 : vector<8x128xf32>
    %cst_7 = arith.constant dense<0.000000e+00> : vector<4x128xf32>
    %20 = tpu.matmul %11, %19, %cst_7 {dimension_numbers = #tpu.dot_dimension_numbers<[0], [0], [1], [1], [0, 1, 1, 1], [], []>} : vector<8x4xf32>, vector<8x128xf32>, vector<4x128xf32> -> vector<4x128xf32>
    %cst_8 = arith.constant dense<0.000000e+00> : vector<128xf32>
    %21 = vector.multi_reduction <add>, %20, %cst_8 [0] : vector<4x128xf32> to vector<128xf32>
    %22 = vector.shape_cast %21 : vector<128xf32> to vector<1x128xf32>
    %23 = tpu.reciprocal %22 {approx = true} : vector<1x128xf32> -> vector<1x128xf32>
    %24 = vector.broadcast %23 : vector<1x128xf32> to vector<4x128xf32>
    %25 = arith.mulf %20, %24 : vector<4x128xf32>
    %c0_9 = arith.constant 0 : index
    %c0_10 = arith.constant 0 : index
    %c0_11 = arith.constant 0 : index
    %26 = vector.load %arg4[%c0_9, %c0_10, %c0_11] : memref<1x4x128xf32, #tpu.memory_space<vmem>>, vector<1x4x128xf32>
    %27 = vector.shape_cast %26 : vector<1x4x128xf32> to vector<4x128xf32>
    %28 = vector.shape_cast %25 : vector<4x128xf32> to vector<1x4x128xf32>
    tpu.vector_store %arg4[%c0_9, %c0_10, %c0_11], %28 {strides = array<i32>} : memref<1x4x128xf32, #tpu.memory_space<vmem>>, vector<1x4x128xf32>,
    return
  }
  func.func @transform_0(%arg0: i32, %arg1: i32) -> (i32, i32, i32) {
    %c0_i32 = arith.constant 0 : i32
    %c0_i32_0 = arith.constant 0 : i32
    %c0_i32_1 = arith.constant 0 : i32
    return %arg0, %c0_i32, %c0_i32_0 : i32, i32, i32
  }
  func.func @transform_1(%arg0: i32, %arg1: i32) -> (i32, i32, i32) {
    %c0_i32 = arith.constant 0 : i32
    %c0_i32_0 = arith.constant 0 : i32
    return %arg0, %c0_i32, %arg1 : i32, i32, i32
  }
  func.func @transform_2(%arg0: i32, %arg1: i32) -> (i32, i32, i32) {
    %c0_i32 = arith.constant 0 : i32
    %c0_i32_0 = arith.constant 0 : i32
    return %arg0, %c0_i32, %arg1 : i32, i32, i32
  }
}

</mosaic_0001>

<llo_original>
// kernel: tpu_custom_call.1
$region0: #{tpu_custom_call.1}
  #allocation0 [shape = 'u32[]', space=smem, size = 0x4, offset = 0x4, fixed_abs, tag = 'smem constant byte address 0x4 - core index']
  #allocation1 [shape = 'u32[144,128]{1,0:T(1,128)}', space=vmem, size = 0x12000, scoped, tag = 'internal scratch']
  %s0 = inlined_call_operand.vmem [shape: f32[2,8,5], index: 0, kind: input, shape index: {}]
  %s1 = inlined_call_operand.hbm [shape: bf16[2,8,512], index: 1, kind: input, shape index: {}]
  %s2 = inlined_call_operand.hbm [shape: f32[2,4,512], index: 2, kind: output, shape index: {}]
  %s3 = sld [smem:[#allocation0]]
  $region45: #{tpu_custom_call.1} parent=0
    _
  %s5 = ssub.s32 1, %s3
  %s6 = scalar_select 0, %s5, %s3
  $region1: #{tpu_custom_call.1} parent=0
    #allocation2 [shape = 'u8[4096]{0}', space=vmem, size = 0x1000, scoped, tag = 'input window, operand 1']
    #allocation3 [shape = 's32[2]{0}', space=sflag, size = 0x8, scoped, tag = 'scoped memory for tpu_custom_call.1']
    #allocation4 [shape = 's32[2]{0}', space=sflag, size = 0x8, scoped, tag = 'scoped memory for tpu_custom_call.1']
    #allocation5 [shape = 'u8[4096]{0}', space=vmem, size = 0x1000, scoped, tag = 'output window, operand 0']
    %7 = vsyncpa [#allocation3], 0
    %s8 = scalar_lea.sflag [#allocation3], 1
    %9 = vsyncpa %s8, 0
    %10 = vsyncpa [#allocation4], 0
    %s11 = scalar_lea.sflag [#allocation4], 1
    %12 = vsyncpa %s11, 0
    loop: start=0, step=1, limit=10
    $region2: #{tpu_custom_call.1} parent=1 // loop_pre_header
      _
    $region3: #{tpu_custom_call.1} parent=1 // loop_header
      %s14 = sphi 0, %s18
      %p15 = scmp.ge.s32.totalorder %s14, 10
      %s21 = sphi 0, %s33
      %s22 = sphi 0, %s29
      %s23 = sphi 0, %s21
      %s24 = sphi 0, %s22
      %s25 = sphi 0, %s23
      %s26 = sphi 0, %s24
      %s36 = sphi 0, %s38
      %s39 = sphi 0, %s36
      %s40 = sphi 0, %s39
      %s56 = sphi 0, %s40
      %s64 = sphi 0, %s66
      %s67 = sphi 0, %s64
      %s68 = sphi 0, %s67
      %s84 = sphi 0, %s68
      %s92 = sphi 0, %s94
      %s95 = sphi 0, %s92
      %s96 = sphi 0, %s95
      %s112 = sphi 0, %s96
    $region4: #{tpu_custom_call.1} parent=1 // loop_header_branch
      %17 = sbr.rel (%p15) target = $region8
    $region5: #{tpu_custom_call.1} parent=1 // loop_body
      %s19 = ssub.s32 %s14, 1
      %s20 = ssub.s32 %s14, 2
      %s27 = sadd.s32 1, %s22
      %p28 = scmp.ge.s32.totalorder %s27, 4
      %s29 = scalar_select %p28, 0, %s27
      %s30 = sadd.s32 1, %s21
      %s31 = scalar_select %p28, %s30, %s21
      %p32 = scmp.ge.s32.totalorder %s31, 2
      %s33 = scalar_select %p32, 0, %s31
      %s34 = ssub.s32 %s21, %s33
      %p35 = scmp.eq.s32.totalorder %s34, 0
      %s37 = sadd.s32 %s36, 1
      %s38 = scalar_select %p35, %s36, %s37
      %p41 = pneg %p35
      %p42 = scmp.eq.s32.totalorder %s14, 7
      %p43 = por %p41, %p42
      %p44 = scmp.ne.s32.totalorder %s36, %s39
      %p45 = scmp.eq.s32.totalorder %s14, 0
      %p46 = por %p44, %p45
      %p47 = scmp.ne.s32.totalorder %s36, %s39
      %p48 = scmp.eq.s32.totalorder %s19, 7
      %p49 = por %p47, %p48
      %p50 = scmp.ne.s32.totalorder %s39, %s40
      %p51 = scmp.eq.s32.totalorder %s19, 0
      %p52 = por %p50, %p51
      %p53 = scmp.ne.s32.totalorder %s39, %s40
      %p54 = scmp.eq.s32.totalorder %s20, 7
      %p55 = por %p53, %p54
      %p57 = scmp.ne.s32.totalorder %s40, %s56
      %p58 = scmp.eq.s32.totalorder %s20, 0
      %p59 = por %p57, %p58
      %s60 = ssub.s32 %s21, %s33
      %s61 = ssub.s32 %s22, %s29
      %s62 = sor.u32 %s60, %s61
      %p63 = scmp.eq.s32.totalorder %s62, 0
      %s65 = sadd.s32 %s64, 1
      %s66 = scalar_select %p63, %s64, %s65
      %p69 = pneg %p63
      %p70 = scmp.eq.s32.totalorder %s14, 7
      %p71 = por %p69, %p70
      %p72 = scmp.ne.s32.totalorder %s64, %s67
      %p73 = scmp.eq.s32.totalorder %s14, 0
      %p74 = por %p72, %p73
      %p75 = scmp.ne.s32.totalorder %s64, %s67
      %p76 = scmp.eq.s32.totalorder %s19, 7
      %p77 = por %p75, %p76
      %p78 = scmp.ne.s32.totalorder %s67, %s68
      %p79 = scmp.eq.s32.totalorder %s19, 0
      %p80 = por %p78, %p79
      %p81 = scmp.ne.s32.totalorder %s67, %s68
      %p82 = scmp.eq.s32.totalorder %s20, 7
      %p83 = por %p81, %p82
      %p85 = scmp.ne.s32.totalorder %s68, %s84
      %p86 = scmp.eq.s32.totalorder %s20, 0
      %p87 = por %p85, %p86
      %s88 = ssub.s32 %s21, %s33
      %s89 = ssub.s32 %s22, %s29
      %s90 = sor.u32 %s88, %s89
      %p91 = scmp.eq.s32.totalorder %s90, 0
      %s93 = sadd.s32 %s92, 1
      %s94 = scalar_select %p91, %s92, %s93
      %p97 = pneg %p91
      %p98 = scmp.eq.s32.totalorder %s14, 7
      %p99 = por %p97, %p98
      %p100 = scmp.ne.s32.totalorder %s92, %s95
      %p101 = scmp.eq.s32.totalorder %s14, 0
      %p102 = por %p100, %p101
      %p103 = scmp.ne.s32.totalorder %s92, %s95
      %p104 = scmp.eq.s32.totalorder %s19, 7
      %p105 = por %p103, %p104
      %p106 = scmp.ne.s32.totalorder %s95, %s96
      %p107 = scmp.eq.s32.totalorder %s19, 0
      %p108 = por %p106, %p107
      %p109 = scmp.ne.s32.totalorder %s95, %s96
      %p110 = scmp.eq.s32.totalorder %s20, 7
      %p111 = por %p109, %p110
      %p113 = scmp.ne.s32.totalorder %s96, %s112
      %p114 = scmp.eq.s32.totalorder %s20, 0
      %p115 = por %p113, %p114
      %p116 = scmp.le.s32.totalorder 1, %s14
      %p117 = scmp.lt.s32.totalorder %s14, 9
      %p118 = pnand %p116, %p117
      %p119 = pneg %p118
      // Predicated region
      $region9: #{tpu_custom_call.1} parent=5 // pred_check
        _
      $region10: #{tpu_custom_call.1} parent=5 // pred_check_branch
        %121 = sbr.rel (%p118) target = $region12
      $region11: #{tpu_custom_call.1} parent=5 // pred_region
        %s122 = ssub.s32 %s14, 1
      $region12: #{tpu_custom_call.1} parent=5 // pred_fallthru
        _
      %p123 = scmp.lt.s32.totalorder %s14, 8
      // Predicated region
      $region13: #{tpu_custom_call.1} parent=5 // pred_check
        %p124 = pneg %p123
      $region14: #{tpu_custom_call.1} parent=5 // pred_check_branch
        %126 = sbr.rel (%p124) target = $region16
      $region15: #{tpu_custom_call.1} parent=5 // pred_region
        // Predicated region
        $region17: #{tpu_custom_call.1} parent=15 // pred_check
          %p127 = pneg %p46
        $region18: #{tpu_custom_call.1} parent=15 // pred_check_branch
          %129 = sbr.rel (%p127) target = $region20
        $region19: #{tpu_custom_call.1} parent=15 // pred_region
          %p130 = scmp.lt.s32.totalorder %s21, 1
          %s131 = scalar_select %p130, %s21, 1
          %s132 = smul.addr %s131, 8
          %s133 = scalar_lea.vmem %s0, %s132
        $region20: #{tpu_custom_call.1} parent=15 // pred_fallthru
          _
        // Predicated region
        $region21: #{tpu_custom_call.1} parent=15 // pred_check
          %p134 = pneg %p74
        $region22: #{tpu_custom_call.1} parent=15 // pred_check_branch
          %136 = sbr.rel (%p134) target = $region24
        $region23: #{tpu_custom_call.1} parent=15 // pred_region
          %s137 = sand.u32 %s64, 1
          %s138 = scalar_lea.sflag [#allocation3], %s137
          %s139 = sand.u32 %s64, 1
          %s140 = smul.addr %s139, 4
          %s141 = scalar_lea.vmem [#allocation2], %s140
          %s143 = ssub.s32 64, 64
          %144 = vsyncadd %s138, %s143
          %s145 = smul.addr %s21, 4
          %s146 = sadd.s32 %s22, %s145
          %s147 = smul.addr %s146, 64
          %s148 = scalar_lea.hbm %s1, %s147
          %s150 = sshll.u32 %s141, 4
          %s151 = int_to_ptr.vmem [resolvable:$true] %s150
          %153 = dma.hbm_to_vmem [thread:$0]  %s148, 64, %s151, %s138
        $region24: #{tpu_custom_call.1} parent=15 // pred_fallthru
          _
      $region16: #{tpu_custom_call.1} parent=5 // pred_fallthru
        _
      %p154 = scmp.le.s32.totalorder 1, %s14
      %p155 = scmp.lt.s32.totalorder %s14, 9
      %p156 = pnand %p154, %p155
      %p157 = pneg %p156
      // Predicated region
      $region25: #{tpu_custom_call.1} parent=5 // pred_check
        _
      $region26: #{tpu_custom_call.1} parent=5 // pred_check_branch
        %159 = sbr.rel (%p156) target = $region28
      $region27: #{tpu_custom_call.1} parent=5 // pred_region
        %s160 = ssub.s32 %s14, 1
        %s161 = sand.u32 %s67, 1
        %s162 = scalar_lea.sflag [#allocation3], %s161
        %s163 = sand.u32 %s67, 1
        %s164 = smul.addr %s163, 4
        %s165 = scalar_lea.vmem [#allocation2], %s164
        // Predicated region
        $region29: #{tpu_custom_call.1} parent=27 // pred_check
          %p166 = pneg %p80
        $region30: #{tpu_custom_call.1} parent=27 // pred_check_branch
          %168 = sbr.rel (%p166) target = $region32
        $region31: #{tpu_custom_call.1} parent=27 // pred_region
          %169 = dma.done %s162, 64
        $region32: #{tpu_custom_call.1} parent=27 // pred_fallthru
          _
        %p170 = scmp.lt.s32.totalorder %s23, 1
        %s171 = scalar_select %p170, %s23, 1
        %s172 = smul.addr %s171, 8
        %s173 = scalar_lea.vmem %s0, %s172
        %p174 = pneg %p52
        %p175 = pneg %p49
        %s176 = sand.u32 %s67, 1
        %s177 = scalar_lea.sflag [#allocation3], %s176
        %s178 = sand.u32 %s67, 1
        %s179 = smul.addr %s178, 4
        %s180 = scalar_lea.vmem [#allocation2], %s179
        %p181 = pneg %p80
        %p182 = pneg %p77
        %p183 = pneg %p108
        %p184 = pneg %p105
        %s185 = sand.u32 %s95, 1
        %s186 = scalar_lea.sflag [#allocation4], %s185
        %s187 = sand.u32 %s95, 1
        %s188 = smul.addr %s187, 4
        %s189 = scalar_lea.vmem [#allocation5], %s188
        %p190 = scmp.lt.s32.totalorder %s23, 1
        %s191 = scalar_select %p190, %s23, 1
        %s192 = smul.addr %s191, 8
        %s193 = scalar_lea.vmem %s0, %s192
        %v194 = vld [vmem:[%s193] sm:$0xff]
        %vm195 = vcmask 39936
        %v196 = vsel %vm195, %v194, -inf
        %197 = vmax.xlane.f32.xlu0 %v196
        %v198 = vpop.xlane.xlu0 %197
        %v199 = vsub.f32 %v194, %v198
        %v200 = vmul.f32 %v199, 1.442695
        %v201 = vpow.pop %v200
        %v202 = vsel %vm195, %v201, 0.0
        %203 = vadd.xlane.f32.xlu0 %v202
        %v204 = vpop.xlane.xlu0 %203
        %v205 = vrcp.pop %v204
        %v206 = vmul.f32 %v201, %v205
        %v207 = vld [vmem:[%s165] sm:$0xf]
        %v208 = vunpack.c.l.bf16 %v207
        %v209 = vxor.u32 %v208, 2147483648
        %v210 = vmul.f32 %v209, 1.442695
        %v211 = vpow.pop %v210
        %v212 = vadd.f32 %v211, 1.0
        %v213 = vrcp.pop %v212
        %v214 = vmul.f32 1.0, %v213
        %215 = vxpose.xlu0.b32.start [1/16] %v206, 128
        %216 = vxpose.xlu0.b32.cont [2/16] 0.0, 128
        %217 = vxpose.xlu0.b32.cont [3/16] 0.0, 128
        %218 = vxpose.xlu0.b32.cont [4/16] 0.0, 128
        %219 = vxpose.xlu0.b32.cont [5/16] 0.0, 128
        %220 = vxpose.xlu0.b32.cont [6/16] 0.0, 128
        %221 = vxpose.xlu0.b32.cont [7/16] 0.0, 128
        %222 = vxpose.xlu0.b32.cont [8/16] 0.0, 128
        %223 = vxpose.xlu0.b32.cont [9/16] 0.0, 128
        %224 = vxpose.xlu0.b32.cont [10/16] 0.0, 128
        %225 = vxpose.xlu0.b32.cont [11/16] 0.0, 128
        %226 = vxpose.xlu0.b32.cont [12/16] 0.0, 128
        %227 = vxpose.xlu0.b32.cont [13/16] 0.0, 128
        %228 = vxpose.xlu0.b32.cont [14/16] 0.0, 128
        %229 = vxpose.xlu0.b32.cont [15/16] 0.0, 128
        %230 = vxpose.xlu0.b32.end [16/16] 0.0, 128
        %v231 = vpop.trf.xlu0
        %v232 = vpop.trf.xlu0
        %v233 = vpop.trf.xlu0
        %v234 = vpop.trf.xlu0
        %v235 = vpop.trf.xlu0
        %v236 = vpop.trf.xlu0
        %v237 = vpop.trf.xlu0
        %v238 = vpop.trf.xlu0
        %v239 = vpop.trf.xlu0
        %v240 = vpop.trf.xlu0
        %v241 = vpop.trf.xlu0
        %v242 = vpop.trf.xlu0
        %v243 = vpop.trf.xlu0
        %v244 = vpop.trf.xlu0
        %v245 = vpop.trf.xlu0
        %v246 = vpop.trf.xlu0
        %vm247 = vcmask 64512
        %v249 = vsel %vm247, %v231, 0
        %251 = vmatprep.subr.mxu0 0.0
        %252 = vmatpush1.msra.mxu0 %v214
        %253 = vmatprep.subr.mxu0 0.0
        %254 = vmatpush1.msra.mxu0 0.0
        %255 = vmatprep.subr.mxu0 0.0
        %256 = vmatpush1.msra.mxu0 0.0
        %257 = vmatprep.subr.mxu0 0.0
        %258 = vmatpush1.msra.mxu0 0.0
        %259 = vmatprep.subr.mxu0 0.0
        %260 = vmatpush1.msra.mxu0 0.0
        %261 = vmatprep.subr.mxu0 0.0
        %262 = vmatpush1.msra.mxu0 0.0
        %263 = vmatprep.subr.mxu0 0.0
        %264 = vmatpush1.msra.mxu0 0.0
        %265 = vmatprep.subr.mxu0 0.0
        %266 = vmatpush1.msra.mxu0 0.0
        %267 = vmatprep.subr.mxu0 0.0
        %268 = vmatpush1.msra.mxu0 0.0
        %269 = vmatprep.subr.mxu0 0.0
        %270 = vmatpush1.msra.mxu0 0.0
        %271 = vmatprep.subr.mxu0 0.0
        %272 = vmatpush1.msra.mxu0 0.0
        %273 = vmatprep.subr.mxu0 0.0
        %274 = vmatpush1.msra.mxu0 0.0
        %275 = vmatprep.subr.mxu0 0.0
        %276 = vmatpush1.msra.mxu0 0.0
        %277 = vmatprep.subr.mxu0 0.0
        %278 = vmatpush1.msra.mxu0 0.0
        %279 = vmatprep.subr.mxu0 0.0
        %280 = vmatpush1.msra.mxu0 0.0
        %281 = vmatprep.subr.mxu0 0.0
        %282 = vmatpush1.msra.mxu0 0.0
        %283 = vmatprep.subr.mxu0 0.0
        %284 = vmatpush1.msra.mxu0 0.0
        %285 = vmatprep.subr.mxu0 0.0
        %286 = vmatpush1.msra.mxu0 0.0
        %287 = vmatprep.subr.mxu0 0.0
        %288 = vmatpush1.msra.mxu0 0.0
        %289 = vmatprep.subr.mxu0 0.0
        %290 = vmatpush1.msra.mxu0 0.0
        %291 = vmatprep.subr.mxu0 0.0
        %292 = vmatpush1.msra.mxu0 0.0
        %293 = vmatprep.subr.mxu0 0.0
        %294 = vmatpush1.msra.mxu0 0.0
        %295 = vmatprep.subr.mxu0 0.0
        %296 = vmatpush1.msra.mxu0 0.0
        %297 = vmatprep.subr.mxu0 0.0
        %298 = vmatpush1.msra.mxu0 0.0
        %299 = vmatprep.subr.mxu0 0.0
        %300 = vmatpush1.msra.mxu0 0.0
        %301 = vmatprep.subr.mxu0 0.0
        %302 = vmatpush1.msra.mxu0 0.0
        %303 = vmatprep.subr.mxu0 0.0
        %304 = vmatpush1.msra.mxu0 0.0
        %305 = vmatprep.subr.mxu0 0.0
        %306 = vmatpush1.msra.mxu0 0.0
        %307 = vmatprep.subr.mxu0 0.0
        %308 = vmatpush1.msra.mxu0 0.0
        %309 = vmatprep.subr.mxu0 0.0
        %310 = vmatpush1.msra.mxu0 0.0
        %311 = vmatprep.subr.mxu0 0.0
        %312 = vmatpush1.msra.mxu0 0.0
        %313 = vmatprep.subr.mxu0 0.0
        %314 = vmatpush1.msra.mxu0 0.0
        %315 = vmatprep.mubr.f32.mxu0 0.0
        %316 = vmatmul.mubr.f32.gmra.mrb[0].mxu0 %v249
        %v317 = vpop.f32.mrb[0].mxu0
        %v318 = vadd.f32 0.0, %v317
        %v319 = vpop.f32.mrb[0].mxu0
        %320 = vdwg.mxu0
        %vm321 = vcmask 1043456
        %v322 = vsel %vm321, %v318, 0.0
        %v323 = vrot.slane %v322, 4
        %v324 = vadd.f32 %v322, %v323
        %v325 = vrot.slane %v324, 2
        %v326 = vadd.f32 %v324, %v325
        %v327 = vrot.slane %v326, 1
        %v328 = vadd.f32 %v326, %v327
        %v329 = vrcp.pop %v328
        %v330 = vmul.f32 %v318, %v329
        %331 = vst [vmem:[%s189] sm:$0xf] %v330
        %s332 = sand.u32 %s95, 1
        %s333 = scalar_lea.sflag [#allocation4], %s332
        %s334 = sand.u32 %s95, 1
        %s335 = smul.addr %s334, 4
        %s336 = scalar_lea.vmem [#allocation5], %s335
        // Predicated region
        $region33: #{tpu_custom_call.1} parent=27 // pred_check
          %p337 = pneg %p105
        $region34: #{tpu_custom_call.1} parent=27 // pred_check_branch
          %339 = sbr.rel (%p337) target = $region36
        $region35: #{tpu_custom_call.1} parent=27 // pred_region
          %s341 = ssub.s32 64, 64
          %342 = vsyncadd %s333, %s341
          %s343 = smul.addr %s23, 4
          %s344 = sadd.s32 %s24, %s343
          %s345 = smul.addr %s344, 64
          %s346 = scalar_lea.hbm %s2, %s345
          %s348 = sshll.u32 %s336, 4
          %s349 = int_to_ptr.vmem [resolvable:$true] %s348
          %351 = dma.vmem_to_hbm [thread:$0]  %s349, 64, %s346, %s333
        $region36: #{tpu_custom_call.1} parent=27 // pred_fallthru
          _
      $region28: #{tpu_custom_call.1} parent=5 // pred_fallthru
        _
      %p352 = scmp.le.s32.totalorder 2, %s14
      // Predicated region
      $region37: #{tpu_custom_call.1} parent=5 // pred_check
        %p353 = pneg %p352
      $region38: #{tpu_custom_call.1} parent=5 // pred_check_branch
        %355 = sbr.rel (%p353) target = $region40
      $region39: #{tpu_custom_call.1} parent=5 // pred_region
        %s356 = ssub.s32 %s14, 2
        // Predicated region
        $region41: #{tpu_custom_call.1} parent=39 // pred_check
          %p357 = pneg %p111
        $region42: #{tpu_custom_call.1} parent=39 // pred_check_branch
          %359 = sbr.rel (%p357) target = $region44
        $region43: #{tpu_custom_call.1} parent=39 // pred_region
          %s360 = sand.u32 %s96, 1
          %s361 = scalar_lea.sflag [#allocation4], %s360
          %s362 = sand.u32 %s96, 1
          %s363 = smul.addr %s362, 4
          %s364 = scalar_lea.vmem [#allocation5], %s363
          %365 = dma.done %s361, 64
        $region44: #{tpu_custom_call.1} parent=39 // pred_fallthru
          _
      $region40: #{tpu_custom_call.1} parent=5 // pred_fallthru
        _
    $region6: #{tpu_custom_call.1} parent=1 // loop_footer
      %s18 = sadd.s32 1, %s14
    $region7: #{tpu_custom_call.1} parent=1 // loop_footer_branch
      %13 = sbr.rel target = $region3
    $region8: #{tpu_custom_call.1} parent=1 // loop_exit
      _
    %366 = vsyncpa [#allocation3], 1
    %s367 = scalar_lea.sflag [#allocation3], 1
    %368 = vsyncpa %s367, 1
    %369 = vsyncpa [#allocation4], 1
    %s370 = scalar_lea.sflag [#allocation4], 1
    %371 = vsyncpa %s370, 1

</llo_original>
